<compile_context>
chip_gen: v6e
topology: v6e:2x2x1
jax: 0.10.0
libtpu: 0.0.40
codegen_flags: <defaults>
</compile_context>

<pallas_src>
import jax
import jax.numpy as jnp
import numpy as np
from jax.experimental import pallas as pl
from jax.experimental.pallas import tpu as pltpu


# ----------------------------- parameter setup -----------------------------

def create_filter(img_size: int, diagonal: int) -> jnp.ndarray:
    """torch: triu(ones, diagonal) then fliplr."""
    f = jnp.ones((img_size, img_size), dtype=jnp.float32)
    f = jnp.triu(f, k=diagonal)
    f = jnp.fliplr(f)
    return f


def build_fused_filter(base, learnable=None, ft_num=None,
                       *, use_learnable=True, norm=False):
    """Grid-invariant filter, computed ONCE outside the kernel.

    filt = base + (2*sigmoid(learnable) - 1)   [if use_learnable]
    filt = filt / ft_num                       [if norm]
    """
    filt = base
    if use_learnable:
        filt = filt + (2.0 * jax.nn.sigmoid(learnable) - 1.0)
    if norm:
        filt = filt / jnp.asarray(ft_num, jnp.float32)
    return filt.astype(jnp.float32)


# ------------------------------- Pallas kernel ------------------------------

def lfilter_kernel(filt_ref, x_ref, o_ref):
    # filt_ref: (H, W) f32   -- same block every grid step (stays resident)
    # x_ref / o_ref: (T, H, W)
    o_ref[...] = (x_ref[...] * filt_ref[...][None, :, :]).astype(o_ref.dtype)


def _choose_tile(nc: int, slab_bytes: int,
                 target_block_bytes: int = 4 << 20) -> int:
    """Slabs per block: ~target_block_bytes per block, but keep the grid at
    least 2 steps long so both v7x TensorCores get work."""
    t = max(1, target_block_bytes // max(slab_bytes, 1))
    t = min(t, nc)
    if nc >= 2:
        t = min(t, pl.cdiv(nc, 2))   # guarantee >= 2 grid steps
    return max(t, 1)


def lfilter_forward(x, base, learnable=None, ft_num=None,
                    *, use_learnable=True, norm=False, tile=None):
    """x: (N, C, H, W); base/learnable: (H, W) f32; ft_num: scalar f32."""
    N, C, H, W = x.shape
    NC = N * C
    xf = x.reshape(NC, H, W)

    # Hoist all grid-invariant math (sigmoid, add, 1/ft_num) out of the kernel.
    filt = build_fused_filter(base, learnable, ft_num,
                              use_learnable=use_learnable, norm=norm)

    slab_bytes = H * W * x.dtype.itemsize
    T = tile if tile is not None else _choose_tile(NC, slab_bytes)
    grid = (pl.cdiv(NC, T),)

    out = pl.pallas_call(
        lfilter_kernel,
        out_shape=jax.ShapeDtypeStruct((NC, H, W), x.dtype),
        grid=grid,
        in_specs=[
            pl.BlockSpec((H, W), lambda i: (0, 0)),        # filter (resident)
            pl.BlockSpec((T, H, W), lambda i: (i, 0, 0)),  # batched x slabs
        ],
        out_specs=pl.BlockSpec((T, H, W), lambda i: (i, 0, 0)),
        compiler_params=pltpu.CompilerParams(
            dimension_semantics=("parallel",),
            # Above v5e/v6e scoped defaults (16/32 MiB), below v7x 64 MiB phys.
            vmem_limit_bytes=48 << 20,
        ),
    )(filt, xf)

    return out.reshape(N, C, H, W)


# ------------------------------- reference ---------------------------------

def lfilter_ref(x, base, learnable, ft_num, *, use_learnable=True, norm=False):
    filt = base + (2.0 * jax.nn.sigmoid(learnable) - 1.0) if use_learnable else base
    if norm:
        return x * filt / ft_num
    return x * filt


# --------------------------------- main -------------------------------------

if __name__ == "__main__":
    IMG = 256            # base filter is hard-coded to 256x256 in the module
    SIZE = 256           # learnable must match base spatial dims for broadcast
    DIAGONAL = 2 * IMG // 3
    USE_LEARNABLE = True
    NORM = True

    key = jax.random.PRNGKey(0)
    k_learn, k_x = jax.random.split(key)

    # Deterministic "parameters" matching the module __init__
    base = create_filter(IMG, DIAGONAL)                                   # (256, 256)
    learnable = 0.1 * jax.random.normal(k_learn, (SIZE, SIZE), jnp.float32)
    ft_num = jnp.sum(base)                                                # scalar

    # Small NCHW input consistent with the forward (256x256 spatial required)
    x = jax.random.normal(k_x, (2, 3, IMG, IMG), jnp.float32)

    y = lfilter_forward(x, base, learnable, ft_num,
                        use_learnable=USE_LEARNABLE, norm=NORM)
    y = jax.block_until_ready(y)

    y_ref = lfilter_ref(x, base, learnable, ft_num,
                        use_learnable=USE_LEARNABLE, norm=NORM)
    np.testing.assert_allclose(np.asarray(y), np.asarray(y_ref),
                               rtol=1e-5, atol=1e-5)

    print("KERNEL_OK")
</pallas_src>

<mosaic_0001>
module attributes {stable_mosaic.version = 11 : i64} {
  func.func @lfilter_kernel(%arg0: i32, %arg1: memref<256x256xf32, #tpu.memory_space<vmem>>, %arg2: memref<3x256x256xf32, #tpu.memory_space<vmem>>, %arg3: memref<3x256x256xf32, #tpu.memory_space<vmem>>) attributes {dimension_semantics = [#tpu.dimension_semantics<parallel>], iteration_bounds = array<i64: 2>, scalar_prefetch = 0 : i64, scratch_operands = 0 : i64, tpu.core_type = #tpu.core_type<tc>, window_params = [{pipeline_mode = #tpu.pipeline_mode<synchronous>, transform_indices = @transform_0, window_bounds = array<i64: 256, 256>}, {transform_indices = @transform_1, window_bounds = array<i64: 3, 256, 256>}, {transform_indices = @transform_2, window_bounds = array<i64: 3, 256, 256>}]} {
    %c0 = arith.constant 0 : index
    %c0_0 = arith.constant 0 : index
    %c0_1 = arith.constant 0 : index
    %0 = vector.load %arg2[%c0, %c0_0, %c0_1] : memref<3x256x256xf32, #tpu.memory_space<vmem>>, vector<3x256x256xf32>
    %c0_2 = arith.constant 0 : index
    %c0_3 = arith.constant 0 : index
    %1 = vector.load %arg1[%c0_2, %c0_3] : memref<256x256xf32, #tpu.memory_space<vmem>>, vector<256x256xf32>
    %2 = vector.shape_cast %1 : vector<256x256xf32> to vector<1x256x256xf32>
    %3 = vector.broadcast %2 : vector<1x256x256xf32> to vector<3x256x256xf32>
    %4 = arith.mulf %0, %3 : vector<3x256x256xf32>
    %c0_4 = arith.constant 0 : index
    %c0_5 = arith.constant 0 : index
    %c0_6 = arith.constant 0 : index
    %5 = vector.load %arg3[%c0_4, %c0_5, %c0_6] : memref<3x256x256xf32, #tpu.memory_space<vmem>>, vector<3x256x256xf32>
    tpu.vector_store %arg3[%c0_4, %c0_5, %c0_6], %4 {strides = array<i32>} : memref<3x256x256xf32, #tpu.memory_space<vmem>>, vector<3x256x256xf32>,
    return
  }
  func.func @transform_0(%arg0: i32) -> (i32, i32) {
    %c0_i32 = arith.constant 0 : i32
    %c0_i32_0 = arith.constant 0 : i32
    %c0_i32_1 = arith.constant 0 : i32
    return %c0_i32, %c0_i32_0 : i32, i32
  }
  func.func @transform_1(%arg0: i32) -> (i32, i32, i32) {
    %c0_i32 = arith.constant 0 : i32
    %c0_i32_0 = arith.constant 0 : i32
    %c0_i32_1 = arith.constant 0 : i32
    return %arg0, %c0_i32, %c0_i32_0 : i32, i32, i32
  }
  func.func @transform_2(%arg0: i32) -> (i32, i32, i32) {
    %c0_i32 = arith.constant 0 : i32
    %c0_i32_0 = arith.constant 0 : i32
    %c0_i32_1 = arith.constant 0 : i32
    return %arg0, %c0_i32, %c0_i32_0 : i32, i32, i32
  }
}

</mosaic_0001>

<llo_original>
// kernel: tpu_custom_call.1
$region0: #{tpu_custom_call.1}
  #allocation0 [shape = 'u32[]', space=smem, size = 0x4, offset = 0x4, fixed_abs, tag = 'smem constant byte address 0x4 - core index']
  #allocation1 [shape = 'u32[144,128]{1,0:T(1,128)}', space=vmem, size = 0x12000, scoped, tag = 'internal scratch']
  %s0 = inlined_call_operand.hbm [shape: f32[256,256], index: 0, kind: input, shape index: {}]
  %s1 = inlined_call_operand.hbm [shape: f32[6,256,256], index: 1, kind: input, shape index: {}]
  %s2 = inlined_call_operand.hbm [shape: f32[6,256,256], index: 2, kind: output, shape index: {}]
  %s3 = sld [smem:[#allocation0]]
  $region49: #{tpu_custom_call.1} parent=0
    _
  %s5 = ssub.s32 1, %s3
  %s6 = scalar_select 0, %s5, %s3
  $region1: #{tpu_custom_call.1} parent=0
    #allocation2 [shape = 'u8[262144]{0}', space=vmem, size = 0x40000, scoped, tag = 'input window, operand 0, single buffered']
    #allocation3 [shape = 's32[2]{0}', space=sflag, size = 0x8, scoped, tag = 'scoped memory for tpu_custom_call.1']
    #allocation4 [shape = 's32[2]{0}', space=sflag, size = 0x8, scoped, tag = 'scoped memory for tpu_custom_call.1']
    #allocation5 [shape = 'u8[1572864]{0}', space=vmem, size = 0x180000, scoped, tag = 'input window, operand 1']
    #allocation6 [shape = 's32[2]{0}', space=sflag, size = 0x8, scoped, tag = 'scoped memory for tpu_custom_call.1']
    #allocation7 [shape = 'u8[1572864]{0}', space=vmem, size = 0x180000, scoped, tag = 'output window, operand 0']
    %7 = vsyncpa [#allocation3], 0
    %8 = vsyncpa [#allocation6], 0
    %s9 = scalar_lea.sflag [#allocation6], 1
    %10 = vsyncpa %s9, 0
    %11 = vsyncpa [#allocation4], 0
    %s12 = scalar_lea.sflag [#allocation4], 1
    %13 = vsyncpa %s12, 0
    loop: start=0, step=1, limit=4
    $region2: #{tpu_custom_call.1} parent=1 // loop_pre_header
      _
    $region3: #{tpu_custom_call.1} parent=1 // loop_header
      %s15 = sphi 0, %s19
      %p16 = scmp.ge.s32.totalorder %s15, 4
      %s23 = sphi 0, %s23
      %s25 = sphi 0, %s23
      %s26 = sphi 0, %s25
      %s40 = sphi 0, %s26
      %s46 = sphi 0, %s48
      %s49 = sphi 0, %s46
      %s50 = sphi 0, %s49
      %s66 = sphi 0, %s50
      %s72 = sphi 0, %s74
      %s75 = sphi 0, %s72
      %s76 = sphi 0, %s75
      %s92 = sphi 0, %s76
    $region4: #{tpu_custom_call.1} parent=1 // loop_header_branch
      %18 = sbr.rel (%p16) target = $region8
    $region5: #{tpu_custom_call.1} parent=1 // loop_body
      %s20 = ssub.s32 %s15, 1
      %s21 = ssub.s32 %s15, 2
      %s22 = sadd.s32 %s15, 1
      %s24 = sadd.s32 %s23, 1
      %p27 = scmp.eq.s32.totalorder %s15, 1
      %p28 = scmp.ne.s32.totalorder %s23, %s25
      %p29 = scmp.eq.s32.totalorder %s15, 0
      %p30 = por %p28, %p29
      %p31 = scmp.ne.s32.totalorder %s23, %s25
      %p32 = scmp.eq.s32.totalorder %s20, 1
      %p33 = por %p31, %p32
      %p34 = scmp.ne.s32.totalorder %s25, %s26
      %p35 = scmp.eq.s32.totalorder %s20, 0
      %p36 = por %p34, %p35
      %p37 = scmp.ne.s32.totalorder %s25, %s26
      %p38 = scmp.eq.s32.totalorder %s21, 1
      %p39 = por %p37, %p38
      %p41 = scmp.ne.s32.totalorder %s26, %s40
      %p42 = scmp.eq.s32.totalorder %s21, 0
      %p43 = por %p41, %p42
      %s44 = ssub.s32 %s15, %s22
      %p45 = scmp.eq.s32.totalorder %s44, 0
      %s47 = sadd.s32 %s46, 1
      %s48 = scalar_select %p45, %s46, %s47
      %p51 = pneg %p45
      %p52 = scmp.eq.s32.totalorder %s15, 1
      %p53 = por %p51, %p52
      %p54 = scmp.ne.s32.totalorder %s46, %s49
      %p55 = scmp.eq.s32.totalorder %s15, 0
      %p56 = por %p54, %p55
      %p57 = scmp.ne.s32.totalorder %s46, %s49
      %p58 = scmp.eq.s32.totalorder %s20, 1
      %p59 = por %p57, %p58
      %p60 = scmp.ne.s32.totalorder %s49, %s50
      %p61 = scmp.eq.s32.totalorder %s20, 0
      %p62 = por %p60, %p61
      %p63 = scmp.ne.s32.totalorder %s49, %s50
      %p64 = scmp.eq.s32.totalorder %s21, 1
      %p65 = por %p63, %p64
      %p67 = scmp.ne.s32.totalorder %s50, %s66
      %p68 = scmp.eq.s32.totalorder %s21, 0
      %p69 = por %p67, %p68
      %s70 = ssub.s32 %s15, %s22
      %p71 = scmp.eq.s32.totalorder %s70, 0
      %s73 = sadd.s32 %s72, 1
      %s74 = scalar_select %p71, %s72, %s73
      %p77 = pneg %p71
      %p78 = scmp.eq.s32.totalorder %s15, 1
      %p79 = por %p77, %p78
      %p80 = scmp.ne.s32.totalorder %s72, %s75
      %p81 = scmp.eq.s32.totalorder %s15, 0
      %p82 = por %p80, %p81
      %p83 = scmp.ne.s32.totalorder %s72, %s75
      %p84 = scmp.eq.s32.totalorder %s20, 1
      %p85 = por %p83, %p84
      %p86 = scmp.ne.s32.totalorder %s75, %s76
      %p87 = scmp.eq.s32.totalorder %s20, 0
      %p88 = por %p86, %p87
      %p89 = scmp.ne.s32.totalorder %s75, %s76
      %p90 = scmp.eq.s32.totalorder %s21, 1
      %p91 = por %p89, %p90
      %p93 = scmp.ne.s32.totalorder %s76, %s92
      %p94 = scmp.eq.s32.totalorder %s21, 0
      %p95 = por %p93, %p94
      %p96 = scmp.le.s32.totalorder 1, %s15
      %p97 = scmp.lt.s32.totalorder %s15, 3
      %p98 = pnand %p96, %p97
      %p99 = pneg %p98
      // Predicated region
      $region9: #{tpu_custom_call.1} parent=5 // pred_check
        _
      $region10: #{tpu_custom_call.1} parent=5 // pred_check_branch
        %101 = sbr.rel (%p98) target = $region12
      $region11: #{tpu_custom_call.1} parent=5 // pred_region
        %s102 = ssub.s32 %s15, 1
        // Predicated region
        $region13: #{tpu_custom_call.1} parent=11 // pred_check
          %p103 = pneg %p36
        $region14: #{tpu_custom_call.1} parent=11 // pred_check_branch
          %105 = sbr.rel (%p103) target = $region16
        $region15: #{tpu_custom_call.1} parent=11 // pred_region
          %s107 = ssub.s32 8192, 8192
          %108 = vsyncadd [#allocation3], %s107
          %s109 = sshll.u32 [#allocation2], 4
          %s110 = int_to_ptr.vmem [resolvable:$true] %s109
          %115 = dma.hbm_to_vmem [thread:$0]  %s0, 8192, %s110, [#allocation3], 256, 256, 16
        $region16: #{tpu_custom_call.1} parent=11 // pred_fallthru
          _
      $region12: #{tpu_custom_call.1} parent=5 // pred_fallthru
        _
      %p116 = scmp.lt.s32.totalorder %s15, 2
      // Predicated region
      $region17: #{tpu_custom_call.1} parent=5 // pred_check
        %p117 = pneg %p116
      $region18: #{tpu_custom_call.1} parent=5 // pred_check_branch
        %119 = sbr.rel (%p117) target = $region20
      $region19: #{tpu_custom_call.1} parent=5 // pred_region
        // Predicated region
        $region21: #{tpu_custom_call.1} parent=19 // pred_check
          %p120 = pneg %p56
        $region22: #{tpu_custom_call.1} parent=19 // pred_check_branch
          %122 = sbr.rel (%p120) target = $region24
        $region23: #{tpu_custom_call.1} parent=19 // pred_region
          %s123 = sand.u32 %s46, 1
          %s124 = scalar_lea.sflag [#allocation6], %s123
          %s125 = sand.u32 %s46, 1
          %s126 = smul.addr %s125, 1536
          %s127 = scalar_lea.vmem [#allocation5], %s126
          %s128 = smul.u32 3, %s15
          %s130 = ssub.s32 24576, 24576
          %131 = vsyncadd %s124, %s130
          %s132 = smul.addr %s128, 64
          %s133 = smul.addr %s132, 128
          %s134 = scalar_lea.hbm %s1, %s133
          %s135 = sshll.u32 %s127, 4
          %s136 = int_to_ptr.vmem [resolvable:$true] %s135
          %141 = dma.hbm_to_vmem [thread:$0]  %s134, 24576, %s136, %s124, 256, 256, 16
        $region24: #{tpu_custom_call.1} parent=19 // pred_fallthru
          _
      $region20: #{tpu_custom_call.1} parent=5 // pred_fallthru
        _
      %p142 = scmp.le.s32.totalorder 1, %s15
      %p143 = scmp.lt.s32.totalorder %s15, 3
      %p144 = pnand %p142, %p143
      %p145 = pneg %p144
      // Predicated region
      $region25: #{tpu_custom_call.1} parent=5 // pred_check
        _
      $region26: #{tpu_custom_call.1} parent=5 // pred_check_branch
        %147 = sbr.rel (%p144) target = $region28
      $region27: #{tpu_custom_call.1} parent=5 // pred_region
        %s148 = ssub.s32 %s15, 1
        // Predicated region
        $region29: #{tpu_custom_call.1} parent=27 // pred_check
          %p149 = pneg %p36
        $region30: #{tpu_custom_call.1} parent=27 // pred_check_branch
          %151 = sbr.rel (%p149) target = $region32
        $region31: #{tpu_custom_call.1} parent=27 // pred_region
          %152 = dma.done [#allocation3], 8192
        $region32: #{tpu_custom_call.1} parent=27 // pred_fallthru
          _
        %s153 = sand.u32 %s49, 1
        %s154 = scalar_lea.sflag [#allocation6], %s153
        %s155 = sand.u32 %s49, 1
        %s156 = smul.addr %s155, 1536
        %s157 = scalar_lea.vmem [#allocation5], %s156
        // Predicated region
        $region33: #{tpu_custom_call.1} parent=27 // pred_check
          %p158 = pneg %p62
        $region34: #{tpu_custom_call.1} parent=27 // pred_check_branch
          %160 = sbr.rel (%p158) target = $region36
        $region35: #{tpu_custom_call.1} parent=27 // pred_region
          %161 = dma.done %s154, 24576
        $region36: #{tpu_custom_call.1} parent=27 // pred_fallthru
          _
        %p162 = pneg %p36
        %p163 = pneg %p33
        %s164 = sand.u32 %s49, 1
        %s165 = scalar_lea.sflag [#allocation6], %s164
        %s166 = sand.u32 %s49, 1
        %s167 = smul.addr %s166, 1536
        %s168 = scalar_lea.vmem [#allocation5], %s167
        %p169 = pneg %p62
        %p170 = pneg %p59
        %p171 = pneg %p88
        %p172 = pneg %p85
        %s173 = sand.u32 %s75, 1
        %s174 = scalar_lea.sflag [#allocation4], %s173
        %s175 = sand.u32 %s75, 1
        %s176 = smul.addr %s175, 1536
        %s177 = scalar_lea.vmem [#allocation7], %s176
        %s178 = smul.u32 3, %s20
        %s179 = smul.u32 3, %s20
        %v180 = vld [vmem:[%s157] sm:$0xff]
        %v181 = vld [vmem:[%s157 + $0x8] sm:$0xff]
        %v182 = vld [vmem:[%s157 + $0x10] sm:$0xff]
        %v183 = vld [vmem:[%s157 + $0x18] sm:$0xff]
        %v184 = vld [vmem:[%s157 + $0x20] sm:$0xff]
        %v185 = vld [vmem:[%s157 + $0x28] sm:$0xff]
        %v186 = vld [vmem:[%s157 + $0x30] sm:$0xff]
        %v187 = vld [vmem:[%s157 + $0x38] sm:$0xff]
        %v188 = vld [vmem:[%s157 + $0x40] sm:$0xff]
        %v189 = vld [vmem:[%s157 + $0x48] sm:$0xff]
        %v190 = vld [vmem:[%s157 + $0x50] sm:$0xff]
        %v191 = vld [vmem:[%s157 + $0x58] sm:$0xff]
        %v192 = vld [vmem:[%s157 + $0x60] sm:$0xff]
        %v193 = vld [vmem:[%s157 + $0x68] sm:$0xff]
        %v194 = vld [vmem:[%s157 + $0x70] sm:$0xff]
        %v195 = vld [vmem:[%s157 + $0x78] sm:$0xff]
        %v196 = vld [vmem:[%s157 + $0x80] sm:$0xff]
        %v197 = vld [vmem:[%s157 + $0x88] sm:$0xff]
        %v198 = vld [vmem:[%s157 + $0x90] sm:$0xff]
        %v199 = vld [vmem:[%s157 + $0x98] sm:$0xff]
        %v200 = vld [vmem:[%s157 + $0xa0] sm:$0xff]
        %v201 = vld [vmem:[%s157 + $0xa8] sm:$0xff]
        %v202 = vld [vmem:[%s157 + $0xb0] sm:$0xff]
        %v203 = vld [vmem:[%s157 + $0xb8] sm:$0xff]
        %v204 = vld [vmem:[%s157 + $0xc0] sm:$0xff]
        %v205 = vld [vmem:[%s157 + $0xc8] sm:$0xff]
        %v206 = vld [vmem:[%s157 + $0xd0] sm:$0xff]
        %v207 = vld [vmem:[%s157 + $0xd8] sm:$0xff]
        %v208 = vld [vmem:[%s157 + $0xe0] sm:$0xff]
        %v209 = vld [vmem:[%s157 + $0xe8] sm:$0xff]
        %v210 = vld [vmem:[%s157 + $0xf0] sm:$0xff]
        %v211 = vld [vmem:[%s157 + $0xf8] sm:$0xff]
        %v212 = vld [vmem:[%s157 + $0x100] sm:$0xff]
        %v213 = vld [vmem:[%s157 + $0x108] sm:$0xff]
        %v214 = vld [vmem:[%s157 + $0x110] sm:$0xff]
        %v215 = vld [vmem:[%s157 + $0x118] sm:$0xff]
        %v216 = vld [vmem:[%s157 + $0x120] sm:$0xff]
        %v217 = vld [vmem:[%s157 + $0x128] sm:$0xff]
        %v218 = vld [vmem:[%s157 + $0x130] sm:$0xff]
        %v219 = vld [vmem:[%s157 + $0x138] sm:$0xff]
        %v220 = vld [vmem:[%s157 + $0x140] sm:$0xff]
        %v221 = vld [vmem:[%s157 + $0x148] sm:$0xff]
        %v222 = vld [vmem:[%s157 + $0x150] sm:$0xff]
        %v223 = vld [vmem:[%s157 + $0x158] sm:$0xff]
        %v224 = vld [vmem:[%s157 + $0x160] sm:$0xff]
        %v225 = vld [vmem:[%s157 + $0x168] sm:$0xff]
        %v226 = vld [vmem:[%s157 + $0x170] sm:$0xff]
        %v227 = vld [vmem:[%s157 + $0x178] sm:$0xff]
        %v228 = vld [vmem:[%s157 + $0x180] sm:$0xff]
        %v229 = vld [vmem:[%s157 + $0x188] sm:$0xff]
        %v230 = vld [vmem:[%s157 + $0x190] sm:$0xff]
        %v231 = vld [vmem:[%s157 + $0x198] sm:$0xff]
        %v232 = vld [vmem:[%s157 + $0x1a0] sm:$0xff]
        %v233 = vld [vmem:[%s157 + $0x1a8] sm:$0xff]
        %v234 = vld [vmem:[%s157 + $0x1b0] sm:$0xff]
        %v235 = vld [vmem:[%s157 + $0x1b8] sm:$0xff]
        %v236 = vld [vmem:[%s157 + $0x1c0] sm:$0xff]
        %v237 = vld [vmem:[%s157 + $0x1c8] sm:$0xff]
        %v238 = vld [vmem:[%s157 + $0x1d0] sm:$0xff]
        %v239 = vld [vmem:[%s157 + $0x1d8] sm:$0xff]
        %v240 = vld [vmem:[%s157 + $0x1e0] sm:$0xff]
        %v241 = vld [vmem:[%s157 + $0x1e8] sm:$0xff]
        %v242 = vld [vmem:[%s157 + $0x1f0] sm:$0xff]
        %v243 = vld [vmem:[%s157 + $0x1f8] sm:$0xff]
        %v244 = vld [vmem:[%s157 + $0x200] sm:$0xff]
        %v245 = vld [vmem:[%s157 + $0x208] sm:$0xff]
        %v246 = vld [vmem:[%s157 + $0x210] sm:$0xff]
        %v247 = vld [vmem:[%s157 + $0x218] sm:$0xff]
        %v248 = vld [vmem:[%s157 + $0x220] sm:$0xff]
        %v249 = vld [vmem:[%s157 + $0x228] sm:$0xff]
        %v250 = vld [vmem:[%s157 + $0x230] sm:$0xff]
        %v251 = vld [vmem:[%s157 + $0x238] sm:$0xff]
        %v252 = vld [vmem:[%s157 + $0x240] sm:$0xff]
        %v253 = vld [vmem:[%s157 + $0x248] sm:$0xff]
        %v254 = vld [vmem:[%s157 + $0x250] sm:$0xff]
        %v255 = vld [vmem:[%s157 + $0x258] sm:$0xff]
        %v256 = vld [vmem:[%s157 + $0x260] sm:$0xff]
        %v257 = vld [vmem:[%s157 + $0x268] sm:$0xff]
        %v258 = vld [vmem:[%s157 + $0x270] sm:$0xff]
        %v259 = vld [vmem:[%s157 + $0x278] sm:$0xff]
        %v260 = vld [vmem:[%s157 + $0x280] sm:$0xff]
        %v261 = vld [vmem:[%s157 + $0x288] sm:$0xff]
        %v262 = vld [vmem:[%s157 + $0x290] sm:$0xff]
        %v263 = vld [vmem:[%s157 + $0x298] sm:$0xff]
        %v264 = vld [vmem:[%s157 + $0x2a0] sm:$0xff]
        %v265 = vld [vmem:[%s157 + $0x2a8] sm:$0xff]
        %v266 = vld [vmem:[%s157 + $0x2b0] sm:$0xff]
        %v267 = vld [vmem:[%s157 + $0x2b8] sm:$0xff]
        %v268 = vld [vmem:[%s157 + $0x2c0] sm:$0xff]
        %v269 = vld [vmem:[%s157 + $0x2c8] sm:$0xff]
        %v270 = vld [vmem:[%s157 + $0x2d0] sm:$0xff]
        %v271 = vld [vmem:[%s157 + $0x2d8] sm:$0xff]
        %v272 = vld [vmem:[%s157 + $0x2e0] sm:$0xff]
        %v273 = vld [vmem:[%s157 + $0x2e8] sm:$0xff]
        %v274 = vld [vmem:[%s157 + $0x2f0] sm:$0xff]
        %v275 = vld [vmem:[%s157 + $0x2f8] sm:$0xff]
        %v276 = vld [vmem:[%s157 + $0x300] sm:$0xff]
        %v277 = vld [vmem:[%s157 + $0x308] sm:$0xff]
        %v278 = vld [vmem:[%s157 + $0x310] sm:$0xff]
        %v279 = vld [vmem:[%s157 + $0x318] sm:$0xff]
        %v280 = vld [vmem:[%s157 + $0x320] sm:$0xff]
        %v281 = vld [vmem:[%s157 + $0x328] sm:$0xff]
        %v282 = vld [vmem:[%s157 + $0x330] sm:$0xff]
        %v283 = vld [vmem:[%s157 + $0x338] sm:$0xff]
        %v284 = vld [vmem:[%s157 + $0x340] sm:$0xff]
        %v285 = vld [vmem:[%s157 + $0x348] sm:$0xff]
        %v286 = vld [vmem:[%s157 + $0x350] sm:$0xff]
        %v287 = vld [vmem:[%s157 + $0x358] sm:$0xff]
        %v288 = vld [vmem:[%s157 + $0x360] sm:$0xff]
        %v289 = vld [vmem:[%s157 + $0x368] sm:$0xff]
        %v290 = vld [vmem:[%s157 + $0x370] sm:$0xff]
        %v291 = vld [vmem:[%s157 + $0x378] sm:$0xff]
        %v292 = vld [vmem:[%s157 + $0x380] sm:$0xff]
        %v293 = vld [vmem:[%s157 + $0x388] sm:$0xff]
        %v294 = vld [vmem:[%s157 + $0x390] sm:$0xff]
        %v295 = vld [vmem:[%s157 + $0x398] sm:$0xff]
        %v296 = vld [vmem:[%s157 + $0x3a0] sm:$0xff]
        %v297 = vld [vmem:[%s157 + $0x3a8] sm:$0xff]
        %v298 = vld [vmem:[%s157 + $0x3b0] sm:$0xff]
        %v299 = vld [vmem:[%s157 + $0x3b8] sm:$0xff]
        %v300 = vld [vmem:[%s157 + $0x3c0] sm:$0xff]
        %v301 = vld [vmem:[%s157 + $0x3c8] sm:$0xff]
        %v302 = vld [vmem:[%s157 + $0x3d0] sm:$0xff]
        %v303 = vld [vmem:[%s157 + $0x3d8] sm:$0xff]
        %v304 = vld [vmem:[%s157 + $0x3e0] sm:$0xff]
        %v305 = vld [vmem:[%s157 + $0x3e8] sm:$0xff]
        %v306 = vld [vmem:[%s157 + $0x3f0] sm:$0xff]
        %v307 = vld [vmem:[%s157 + $0x3f8] sm:$0xff]
        %v308 = vld [vmem:[%s157 + $0x400] sm:$0xff]
        %v309 = vld [vmem:[%s157 + $0x408] sm:$0xff]
        %v310 = vld [vmem:[%s157 + $0x410] sm:$0xff]
        %v311 = vld [vmem:[%s157 + $0x418] sm:$0xff]
        %v312 = vld [vmem:[%s157 + $0x420] sm:$0xff]
        %v313 = vld [vmem:[%s157 + $0x428] sm:$0xff]
        %v314 = vld [vmem:[%s157 + $0x430] sm:$0xff]
        %v315 = vld [vmem:[%s157 + $0x438] sm:$0xff]
        %v316 = vld [vmem:[%s157 + $0x440] sm:$0xff]
        %v317 = vld [vmem:[%s157 + $0x448] sm:$0xff]
        %v318 = vld [vmem:[%s157 + $0x450] sm:$0xff]
        %v319 = vld [vmem:[%s157 + $0x458] sm:$0xff]
        %v320 = vld [vmem:[%s157 + $0x460] sm:$0xff]
        %v321 = vld [vmem:[%s157 + $0x468] sm:$0xff]
        %v322 = vld [vmem:[%s157 + $0x470] sm:$0xff]
        %v323 = vld [vmem:[%s157 + $0x478] sm:$0xff]
        %v324 = vld [vmem:[%s157 + $0x480] sm:$0xff]
        %v325 = vld [vmem:[%s157 + $0x488] sm:$0xff]
        %v326 = vld [vmem:[%s157 + $0x490] sm:$0xff]
        %v327 = vld [vmem:[%s157 + $0x498] sm:$0xff]
        %v328 = vld [vmem:[%s157 + $0x4a0] sm:$0xff]
        %v329 = vld [vmem:[%s157 + $0x4a8] sm:$0xff]
        %v330 = vld [vmem:[%s157 + $0x4b0] sm:$0xff]
        %v331 = vld [vmem:[%s157 + $0x4b8] sm:$0xff]
        %v332 = vld [vmem:[%s157 + $0x4c0] sm:$0xff]
        %v333 = vld [vmem:[%s157 + $0x4c8] sm:$0xff]
        %v334 = vld [vmem:[%s157 + $0x4d0] sm:$0xff]
        %v335 = vld [vmem:[%s157 + $0x4d8] sm:$0xff]
        %v336 = vld [vmem:[%s157 + $0x4e0] sm:$0xff]
        %v337 = vld [vmem:[%s157 + $0x4e8] sm:$0xff]
        %v338 = vld [vmem:[%s157 + $0x4f0] sm:$0xff]
        %v339 = vld [vmem:[%s157 + $0x4f8] sm:$0xff]
        %v340 = vld [vmem:[%s157 + $0x500] sm:$0xff]
        %v341 = vld [vmem:[%s157 + $0x508] sm:$0xff]
        %v342 = vld [vmem:[%s157 + $0x510] sm:$0xff]
        %v343 = vld [vmem:[%s157 + $0x518] sm:$0xff]
        %v344 = vld [vmem:[%s157 + $0x520] sm:$0xff]
        %v345 = vld [vmem:[%s157 + $0x528] sm:$0xff]
        %v346 = vld [vmem:[%s157 + $0x530] sm:$0xff]
        %v347 = vld [vmem:[%s157 + $0x538] sm:$0xff]
        %v348 = vld [vmem:[%s157 + $0x540] sm:$0xff]
        %v349 = vld [vmem:[%s157 + $0x548] sm:$0xff]
        %v350 = vld [vmem:[%s157 + $0x550] sm:$0xff]
        %v351 = vld [vmem:[%s157 + $0x558] sm:$0xff]
        %v352 = vld [vmem:[%s157 + $0x560] sm:$0xff]
        %v353 = vld [vmem:[%s157 + $0x568] sm:$0xff]
        %v354 = vld [vmem:[%s157 + $0x570] sm:$0xff]
        %v355 = vld [vmem:[%s157 + $0x578] sm:$0xff]
        %v356 = vld [vmem:[%s157 + $0x580] sm:$0xff]
        %v357 = vld [vmem:[%s157 + $0x588] sm:$0xff]
        %v358 = vld [vmem:[%s157 + $0x590] sm:$0xff]
        %v359 = vld [vmem:[%s157 + $0x598] sm:$0xff]
        %v360 = vld [vmem:[%s157 + $0x5a0] sm:$0xff]
        %v361 = vld [vmem:[%s157 + $0x5a8] sm:$0xff]
        %v362 = vld [vmem:[%s157 + $0x5b0] sm:$0xff]
        %v363 = vld [vmem:[%s157 + $0x5b8] sm:$0xff]
        %v364 = vld [vmem:[%s157 + $0x5c0] sm:$0xff]
        %v365 = vld [vmem:[%s157 + $0x5c8] sm:$0xff]
        %v366 = vld [vmem:[%s157 + $0x5d0] sm:$0xff]
        %v367 = vld [vmem:[%s157 + $0x5d8] sm:$0xff]
        %v368 = vld [vmem:[%s157 + $0x5e0] sm:$0xff]
        %v369 = vld [vmem:[%s157 + $0x5e8] sm:$0xff]
        %v370 = vld [vmem:[%s157 + $0x5f0] sm:$0xff]
        %v371 = vld [vmem:[%s157 + $0x5f8] sm:$0xff]
        %v372 = vld [vmem:[#allocation2] sm:$0xff]
        %v373 = vld [vmem:[#allocation2 + $0x8] sm:$0xff]
        %v374 = vld [vmem:[#allocation2 + $0x10] sm:$0xff]
        %v375 = vld [vmem:[#allocation2 + $0x18] sm:$0xff]
        %v376 = vld [vmem:[#allocation2 + $0x20] sm:$0xff]
        %v377 = vld [vmem:[#allocation2 + $0x28] sm:$0xff]
        %v378 = vld [vmem:[#allocation2 + $0x30] sm:$0xff]
        %v379 = vld [vmem:[#allocation2 + $0x38] sm:$0xff]
        %v380 = vld [vmem:[#allocation2 + $0x40] sm:$0xff]
        %v381 = vld [vmem:[#allocation2 + $0x48] sm:$0xff]
        %v382 = vld [vmem:[#allocation2 + $0x50] sm:$0xff]
        %v383 = vld [vmem:[#allocation2 + $0x58] sm:$0xff]
        %v384 = vld [vmem:[#allocation2 + $0x60] sm:$0xff]
        %v385 = vld [vmem:[#allocation2 + $0x68] sm:$0xff]
        %v386 = vld [vmem:[#allocation2 + $0x70] sm:$0xff]
        %v387 = vld [vmem:[#allocation2 + $0x78] sm:$0xff]
        %v388 = vld [vmem:[#allocation2 + $0x80] sm:$0xff]
        %v389 = vld [vmem:[#allocation2 + $0x88] sm:$0xff]
        %v390 = vld [vmem:[#allocation2 + $0x90] sm:$0xff]
        %v391 = vld [vmem:[#allocation2 + $0x98] sm:$0xff]
        %v392 = vld [vmem:[#allocation2 + $0xa0] sm:$0xff]
        %v393 = vld [vmem:[#allocation2 + $0xa8] sm:$0xff]
        %v394 = vld [vmem:[#allocation2 + $0xb0] sm:$0xff]
        %v395 = vld [vmem:[#allocation2 + $0xb8] sm:$0xff]
        %v396 = vld [vmem:[#allocation2 + $0xc0] sm:$0xff]
        %v397 = vld [vmem:[#allocation2 + $0xc8] sm:$0xff]
        %v398 = vld [vmem:[#allocation2 + $0xd0] sm:$0xff]
        %v399 = vld [vmem:[#allocation2 + $0xd8] sm:$0xff]
        %v400 = vld [vmem:[#allocation2 + $0xe0] sm:$0xff]
        %v401 = vld [vmem:[#allocation2 + $0xe8] sm:$0xff]
        %v402 = vld [vmem:[#allocation2 + $0xf0] sm:$0xff]
        %v403 = vld [vmem:[#allocation2 + $0xf8] sm:$0xff]
        %v404 = vld [vmem:[#allocation2 + $0x100] sm:$0xff]
        %v405 = vld [vmem:[#allocation2 + $0x108] sm:$0xff]
        %v406 = vld [vmem:[#allocation2 + $0x110] sm:$0xff]
        %v407 = vld [vmem:[#allocation2 + $0x118] sm:$0xff]
        %v408 = vld [vmem:[#allocation2 + $0x120] sm:$0xff]
        %v409 = vld [vmem:[#allocation2 + $0x128] sm:$0xff]
        %v410 = vld [vmem:[#allocation2 + $0x130] sm:$0xff]
        %v411 = vld [vmem:[#allocation2 + $0x138] sm:$0xff]
        %v412 = vld [vmem:[#allocation2 + $0x140] sm:$0xff]
        %v413 = vld [vmem:[#allocation2 + $0x148] sm:$0xff]
        %v414 = vld [vmem:[#allocation2 + $0x150] sm:$0xff]
        %v415 = vld [vmem:[#allocation2 + $0x158] sm:$0xff]
        %v416 = vld [vmem:[#allocation2 + $0x160] sm:$0xff]
        %v417 = vld [vmem:[#allocation2 + $0x168] sm:$0xff]
        %v418 = vld [vmem:[#allocation2 + $0x170] sm:$0xff]
        %v419 = vld [vmem:[#allocation2 + $0x178] sm:$0xff]
        %v420 = vld [vmem:[#allocation2 + $0x180] sm:$0xff]
        %v421 = vld [vmem:[#allocation2 + $0x188] sm:$0xff]
        %v422 = vld [vmem:[#allocation2 + $0x190] sm:$0xff]
        %v423 = vld [vmem:[#allocation2 + $0x198] sm:$0xff]
        %v424 = vld [vmem:[#allocation2 + $0x1a0] sm:$0xff]
        %v425 = vld [vmem:[#allocation2 + $0x1a8] sm:$0xff]
        %v426 = vld [vmem:[#allocation2 + $0x1b0] sm:$0xff]
        %v427 = vld [vmem:[#allocation2 + $0x1b8] sm:$0xff]
        %v428 = vld [vmem:[#allocation2 + $0x1c0] sm:$0xff]
        %v429 = vld [vmem:[#allocation2 + $0x1c8] sm:$0xff]
        %v430 = vld [vmem:[#allocation2 + $0x1d0] sm:$0xff]
        %v431 = vld [vmem:[#allocation2 + $0x1d8] sm:$0xff]
        %v432 = vld [vmem:[#allocation2 + $0x1e0] sm:$0xff]
        %v433 = vld [vmem:[#allocation2 + $0x1e8] sm:$0xff]
        %v434 = vld [vmem:[#allocation2 + $0x1f0] sm:$0xff]
        %v435 = vld [vmem:[#allocation2 + $0x1f8] sm:$0xff]
        %v436 = vmul.f32 %v180, %v372
        %v437 = vmul.f32 %v181, %v373
        %v438 = vmul.f32 %v182, %v374
        %v439 = vmul.f32 %v183, %v375
        %v440 = vmul.f32 %v184, %v376
        %v441 = vmul.f32 %v185, %v377
        %v442 = vmul.f32 %v186, %v378
        %v443 = vmul.f32 %v187, %v379
        %v444 = vmul.f32 %v188, %v380
        %v445 = vmul.f32 %v189, %v381
        %v446 = vmul.f32 %v190, %v382
        %v447 = vmul.f32 %v191, %v383
        %v448 = vmul.f32 %v192, %v384
        %v449 = vmul.f32 %v193, %v385
        %v450 = vmul.f32 %v194, %v386
        %v451 = vmul.f32 %v195, %v387
        %v452 = vmul.f32 %v196, %v388
        %v453 = vmul.f32 %v197, %v389
        %v454 = vmul.f32 %v198, %v390
        %v455 = vmul.f32 %v199, %v391
        %v456 = vmul.f32 %v200, %v392
        %v457 = vmul.f32 %v201, %v393
        %v458 = vmul.f32 %v202, %v394
        %v459 = vmul.f32 %v203, %v395
        %v460 = vmul.f32 %v204, %v396
        %v461 = vmul.f32 %v205, %v397
        %v462 = vmul.f32 %v206, %v398
        %v463 = vmul.f32 %v207, %v399
        %v464 = vmul.f32 %v208, %v400
        %v465 = vmul.f32 %v209, %v401
        %v466 = vmul.f32 %v210, %v402
        %v467 = vmul.f32 %v211, %v403
        %v468 = vmul.f32 %v212, %v404
        %v469 = vmul.f32 %v213, %v405
        %v470 = vmul.f32 %v214, %v406
        %v471 = vmul.f32 %v215, %v407
        %v472 = vmul.f32 %v216, %v408
        %v473 = vmul.f32 %v217, %v409
        %v474 = vmul.f32 %v218, %v410
        %v475 = vmul.f32 %v219, %v411
        %v476 = vmul.f32 %v220, %v412
        %v477 = vmul.f32 %v221, %v413
        %v478 = vmul.f32 %v222, %v414
        %v479 = vmul.f32 %v223, %v415
        %v480 = vmul.f32 %v224, %v416
        %v481 = vmul.f32 %v225, %v417
        %v482 = vmul.f32 %v226, %v418
        %v483 = vmul.f32 %v227, %v419
        %v484 = vmul.f32 %v228, %v420
        %v485 = vmul.f32 %v229, %v421
        %v486 = vmul.f32 %v230, %v422
        %v487 = vmul.f32 %v231, %v423
        %v488 = vmul.f32 %v232, %v424
        %v489 = vmul.f32 %v233, %v425
        %v490 = vmul.f32 %v234, %v426
        %v491 = vmul.f32 %v235, %v427
        %v492 = vmul.f32 %v236, %v428
        %v493 = vmul.f32 %v237, %v429
        %v494 = vmul.f32 %v238, %v430
        %v495 = vmul.f32 %v239, %v431
        %v496 = vmul.f32 %v240, %v432
        %v497 = vmul.f32 %v241, %v433
        %v498 = vmul.f32 %v242, %v434
        %v499 = vmul.f32 %v243, %v435
        %v500 = vmul.f32 %v244, %v372
        %v501 = vmul.f32 %v245, %v373
        %v502 = vmul.f32 %v246, %v374
        %v503 = vmul.f32 %v247, %v375
        %v504 = vmul.f32 %v248, %v376
        %v505 = vmul.f32 %v249, %v377
        %v506 = vmul.f32 %v250, %v378
        %v507 = vmul.f32 %v251, %v379
        %v508 = vmul.f32 %v252, %v380
        %v509 = vmul.f32 %v253, %v381
        %v510 = vmul.f32 %v254, %v382
        %v511 = vmul.f32 %v255, %v383
        %v512 = vmul.f32 %v256, %v384
        %v513 = vmul.f32 %v257, %v385
        %v514 = vmul.f32 %v258, %v386
        %v515 = vmul.f32 %v259, %v387
        %v516 = vmul.f32 %v260, %v388
        %v517 = vmul.f32 %v261, %v389
        %v518 = vmul.f32 %v262, %v390
        %v519 = vmul.f32 %v263, %v391
        %v520 = vmul.f32 %v264, %v392
        %v521 = vmul.f32 %v265, %v393
        %v522 = vmul.f32 %v266, %v394
        %v523 = vmul.f32 %v267, %v395
        %v524 = vmul.f32 %v268, %v396
        %v525 = vmul.f32 %v269, %v397
        %v526 = vmul.f32 %v270, %v398
        %v527 = vmul.f32 %v271, %v399
        %v528 = vmul.f32 %v272, %v400
        %v529 = vmul.f32 %v273, %v401
        %v530 = vmul.f32 %v274, %v402
        %v531 = vmul.f32 %v275, %v403
        %v532 = vmul.f32 %v276, %v404
        %v533 = vmul.f32 %v277, %v405
        %v534 = vmul.f32 %v278, %v406
        %v535 = vmul.f32 %v279, %v407
        %v536 = vmul.f32 %v280, %v408
        %v537 = vmul.f32 %v281, %v409
        %v538 = vmul.f32 %v282, %v410
        %v539 = vmul.f32 %v283, %v411
        %v540 = vmul.f32 %v284, %v412
        %v541 = vmul.f32 %v285, %v413
        %v542 = vmul.f32 %v286, %v414
        %v543 = vmul.f32 %v287, %v415
        %v544 = vmul.f32 %v288, %v416
        %v545 = vmul.f32 %v289, %v417
        %v546 = vmul.f32 %v290, %v418
        %v547 = vmul.f32 %v291, %v419
        %v548 = vmul.f32 %v292, %v420
        %v549 = vmul.f32 %v293, %v421
        %v550 = vmul.f32 %v294, %v422
        %v551 = vmul.f32 %v295, %v423
        %v552 = vmul.f32 %v296, %v424
        %v553 = vmul.f32 %v297, %v425
        %v554 = vmul.f32 %v298, %v426
        %v555 = vmul.f32 %v299, %v427
        %v556 = vmul.f32 %v300, %v428
        %v557 = vmul.f32 %v301, %v429
        %v558 = vmul.f32 %v302, %v430
        %v559 = vmul.f32 %v303, %v431
        %v560 = vmul.f32 %v304, %v432
        %v561 = vmul.f32 %v305, %v433
        %v562 = vmul.f32 %v306, %v434
        %v563 = vmul.f32 %v307, %v435
        %v564 = vmul.f32 %v308, %v372
        %v565 = vmul.f32 %v309, %v373
        %v566 = vmul.f32 %v310, %v374
        %v567 = vmul.f32 %v311, %v375
        %v568 = vmul.f32 %v312, %v376
        %v569 = vmul.f32 %v313, %v377
        %v570 = vmul.f32 %v314, %v378
        %v571 = vmul.f32 %v315, %v379
        %v572 = vmul.f32 %v316, %v380
        %v573 = vmul.f32 %v317, %v381
        %v574 = vmul.f32 %v318, %v382
        %v575 = vmul.f32 %v319, %v383
        %v576 = vmul.f32 %v320, %v384
        %v577 = vmul.f32 %v321, %v385
        %v578 = vmul.f32 %v322, %v386
        %v579 = vmul.f32 %v323, %v387
        %v580 = vmul.f32 %v324, %v388
        %v581 = vmul.f32 %v325, %v389
        %v582 = vmul.f32 %v326, %v390
        %v583 = vmul.f32 %v327, %v391
        %v584 = vmul.f32 %v328, %v392
        %v585 = vmul.f32 %v329, %v393
        %v586 = vmul.f32 %v330, %v394
        %v587 = vmul.f32 %v331, %v395
        %v588 = vmul.f32 %v332, %v396
        %v589 = vmul.f32 %v333, %v397
        %v590 = vmul.f32 %v334, %v398
        %v591 = vmul.f32 %v335, %v399
        %v592 = vmul.f32 %v336, %v400
        %v593 = vmul.f32 %v337, %v401
        %v594 = vmul.f32 %v338, %v402
        %v595 = vmul.f32 %v339, %v403
        %v596 = vmul.f32 %v340, %v404
        %v597 = vmul.f32 %v341, %v405
        %v598 = vmul.f32 %v342, %v406
        %v599 = vmul.f32 %v343, %v407
        %v600 = vmul.f32 %v344, %v408
        %v601 = vmul.f32 %v345, %v409
        %v602 = vmul.f32 %v346, %v410
        %v603 = vmul.f32 %v347, %v411
        %v604 = vmul.f32 %v348, %v412
        %v605 = vmul.f32 %v349, %v413
        %v606 = vmul.f32 %v350, %v414
        %v607 = vmul.f32 %v351, %v415
        %v608 = vmul.f32 %v352, %v416
        %v609 = vmul.f32 %v353, %v417
        %v610 = vmul.f32 %v354, %v418
        %v611 = vmul.f32 %v355, %v419
        %v612 = vmul.f32 %v356, %v420
        %v613 = vmul.f32 %v357, %v421
        %v614 = vmul.f32 %v358, %v422
        %v615 = vmul.f32 %v359, %v423
        %v616 = vmul.f32 %v360, %v424
        %v617 = vmul.f32 %v361, %v425
        %v618 = vmul.f32 %v362, %v426
        %v619 = vmul.f32 %v363, %v427
        %v620 = vmul.f32 %v364, %v428
        %v621 = vmul.f32 %v365, %v429
        %v622 = vmul.f32 %v366, %v430
        %v623 = vmul.f32 %v367, %v431
        %v624 = vmul.f32 %v368, %v432
        %v625 = vmul.f32 %v369, %v433
        %v626 = vmul.f32 %v370, %v434
        %v627 = vmul.f32 %v371, %v435
        %628 = vst [vmem:[%s177] sm:$0xff] %v436
        %629 = vst [vmem:[%s177 + $0x8] sm:$0xff] %v437
        %630 = vst [vmem:[%s177 + $0x10] sm:$0xff] %v438
        %631 = vst [vmem:[%s177 + $0x18] sm:$0xff] %v439
        %632 = vst [vmem:[%s177 + $0x20] sm:$0xff] %v440
        %633 = vst [vmem:[%s177 + $0x28] sm:$0xff] %v441
        %634 = vst [vmem:[%s177 + $0x30] sm:$0xff] %v442
        %635 = vst [vmem:[%s177 + $0x38] sm:$0xff] %v443
        %636 = vst [vmem:[%s177 + $0x40] sm:$0xff] %v444
        %637 = vst [vmem:[%s177 + $0x48] sm:$0xff] %v445
        %638 = vst [vmem:[%s177 + $0x50] sm:$0xff] %v446
        %639 = vst [vmem:[%s177 + $0x58] sm:$0xff] %v447
        %640 = vst [vmem:[%s177 + $0x60] sm:$0xff] %v448
        %641 = vst [vmem:[%s177 + $0x68] sm:$0xff] %v449
        %642 = vst [vmem:[%s177 + $0x70] sm:$0xff] %v450
        %643 = vst [vmem:[%s177 + $0x78] sm:$0xff] %v451
        %644 = vst [vmem:[%s177 + $0x80] sm:$0xff] %v452
        %645 = vst [vmem:[%s177 + $0x88] sm:$0xff] %v453
        %646 = vst [vmem:[%s177 + $0x90] sm:$0xff] %v454
        %647 = vst [vmem:[%s177 + $0x98] sm:$0xff] %v455
        %648 = vst [vmem:[%s177 + $0xa0] sm:$0xff] %v456
        %649 = vst [vmem:[%s177 + $0xa8] sm:$0xff] %v457
        %650 = vst [vmem:[%s177 + $0xb0] sm:$0xff] %v458
        %651 = vst [vmem:[%s177 + $0xb8] sm:$0xff] %v459
        %652 = vst [vmem:[%s177 + $0xc0] sm:$0xff] %v460
        %653 = vst [vmem:[%s177 + $0xc8] sm:$0xff] %v461
        %654 = vst [vmem:[%s177 + $0xd0] sm:$0xff] %v462
        %655 = vst [vmem:[%s177 + $0xd8] sm:$0xff] %v463
        %656 = vst [vmem:[%s177 + $0xe0] sm:$0xff] %v464
        %657 = vst [vmem:[%s177 + $0xe8] sm:$0xff] %v465
        %658 = vst [vmem:[%s177 + $0xf0] sm:$0xff] %v466
        %659 = vst [vmem:[%s177 + $0xf8] sm:$0xff] %v467
        %660 = vst [vmem:[%s177 + $0x100] sm:$0xff] %v468
        %661 = vst [vmem:[%s177 + $0x108] sm:$0xff] %v469
        %662 = vst [vmem:[%s177 + $0x110] sm:$0xff] %v470
        %663 = vst [vmem:[%s177 + $0x118] sm:$0xff] %v471
        %664 = vst [vmem:[%s177 + $0x120] sm:$0xff] %v472
        %665 = vst [vmem:[%s177 + $0x128] sm:$0xff] %v473
        %666 = vst [vmem:[%s177 + $0x130] sm:$0xff] %v474
        %667 = vst [vmem:[%s177 + $0x138] sm:$0xff] %v475
        %668 = vst [vmem:[%s177 + $0x140] sm:$0xff] %v476
        %669 = vst [vmem:[%s177 + $0x148] sm:$0xff] %v477
        %670 = vst [vmem:[%s177 + $0x150] sm:$0xff] %v478
        %671 = vst [vmem:[%s177 + $0x158] sm:$0xff] %v479
        %672 = vst [vmem:[%s177 + $0x160] sm:$0xff] %v480
        %673 = vst [vmem:[%s177 + $0x168] sm:$0xff] %v481
        %674 = vst [vmem:[%s177 + $0x170] sm:$0xff] %v482
        %675 = vst [vmem:[%s177 + $0x178] sm:$0xff] %v483
        %676 = vst [vmem:[%s177 + $0x180] sm:$0xff] %v484
        %677 = vst [vmem:[%s177 + $0x188] sm:$0xff] %v485
        %678 = vst [vmem:[%s177 + $0x190] sm:$0xff] %v486
        %679 = vst [vmem:[%s177 + $0x198] sm:$0xff] %v487
        %680 = vst [vmem:[%s177 + $0x1a0] sm:$0xff] %v488
        %681 = vst [vmem:[%s177 + $0x1a8] sm:$0xff] %v489
        %682 = vst [vmem:[%s177 + $0x1b0] sm:$0xff] %v490
        %683 = vst [vmem:[%s177 + $0x1b8] sm:$0xff] %v491
        %684 = vst [vmem:[%s177 + $0x1c0] sm:$0xff] %v492
        %685 = vst [vmem:[%s177 + $0x1c8] sm:$0xff] %v493
        %686 = vst [vmem:[%s177 + $0x1d0] sm:$0xff] %v494
        %687 = vst [vmem:[%s177 + $0x1d8] sm:$0xff] %v495
        %688 = vst [vmem:[%s177 + $0x1e0] sm:$0xff] %v496
        %689 = vst [vmem:[%s177 + $0x1e8] sm:$0xff] %v497
        %690 = vst [vmem:[%s177 + $0x1f0] sm:$0xff] %v498
        %691 = vst [vmem:[%s177 + $0x1f8] sm:$0xff] %v499
        %692 = vst [vmem:[%s177 + $0x200] sm:$0xff] %v500
        %693 = vst [vmem:[%s177 + $0x208] sm:$0xff] %v501
        %694 = vst [vmem:[%s177 + $0x210] sm:$0xff] %v502
        %695 = vst [vmem:[%s177 + $0x218] sm:$0xff] %v503
        %696 = vst [vmem:[%s177 + $0x220] sm:$0xff] %v504
        %697 = vst [vmem:[%s177 + $0x228] sm:$0xff] %v505
        %698 = vst [vmem:[%s177 + $0x230] sm:$0xff] %v506
        %699 = vst [vmem:[%s177 + $0x238] sm:$0xff] %v507
        %700 = vst [vmem:[%s177 + $0x240] sm:$0xff] %v508
        %701 = vst [vmem:[%s177 + $0x248] sm:$0xff] %v509
        %702 = vst [vmem:[%s177 + $0x250] sm:$0xff] %v510
        %703 = vst [vmem:[%s177 + $0x258] sm:$0xff] %v511
        %704 = vst [vmem:[%s177 + $0x260] sm:$0xff] %v512
        %705 = vst [vmem:[%s177 + $0x268] sm:$0xff] %v513
        %706 = vst [vmem:[%s177 + $0x270] sm:$0xff] %v514
        %707 = vst [vmem:[%s177 + $0x278] sm:$0xff] %v515
        %708 = vst [vmem:[%s177 + $0x280] sm:$0xff] %v516
        %709 = vst [vmem:[%s177 + $0x288] sm:$0xff] %v517
        %710 = vst [vmem:[%s177 + $0x290] sm:$0xff] %v518
        %711 = vst [vmem:[%s177 + $0x298] sm:$0xff] %v519
        %712 = vst [vmem:[%s177 + $0x2a0] sm:$0xff] %v520
        %713 = vst [vmem:[%s177 + $0x2a8] sm:$0xff] %v521
        %714 = vst [vmem:[%s177 + $0x2b0] sm:$0xff] %v522
        %715 = vst [vmem:[%s177 + $0x2b8] sm:$0xff] %v523
        %716 = vst [vmem:[%s177 + $0x2c0] sm:$0xff] %v524
        %717 = vst [vmem:[%s177 + $0x2c8] sm:$0xff] %v525
        %718 = vst [vmem:[%s177 + $0x2d0] sm:$0xff] %v526
        %719 = vst [vmem:[%s177 + $0x2d8] sm:$0xff] %v527
        %720 = vst [vmem:[%s177 + $0x2e0] sm:$0xff] %v528
        %721 = vst [vmem:[%s177 + $0x2e8] sm:$0xff] %v529
        %722 = vst [vmem:[%s177 + $0x2f0] sm:$0xff] %v530
        %723 = vst [vmem:[%s177 + $0x2f8] sm:$0xff] %v531
        %724 = vst [vmem:[%s177 + $0x300] sm:$0xff] %v532
        %725 = vst [vmem:[%s177 + $0x308] sm:$0xff] %v533
        %726 = vst [vmem:[%s177 + $0x310] sm:$0xff] %v534
        %727 = vst [vmem:[%s177 + $0x318] sm:$0xff] %v535
        %728 = vst [vmem:[%s177 + $0x320] sm:$0xff] %v536
        %729 = vst [vmem:[%s177 + $0x328] sm:$0xff] %v537
        %730 = vst [vmem:[%s177 + $0x330] sm:$0xff] %v538
        %731 = vst [vmem:[%s177 + $0x338] sm:$0xff] %v539
        %732 = vst [vmem:[%s177 + $0x340] sm:$0xff] %v540
        %733 = vst [vmem:[%s177 + $0x348] sm:$0xff] %v541
        %734 = vst [vmem:[%s177 + $0x350] sm:$0xff] %v542
        %735 = vst [vmem:[%s177 + $0x358] sm:$0xff] %v543
        %736 = vst [vmem:[%s177 + $0x360] sm:$0xff] %v544
        %737 = vst [vmem:[%s177 + $0x368] sm:$0xff] %v545
        %738 = vst [vmem:[%s177 + $0x370] sm:$0xff] %v546
        %739 = vst [vmem:[%s177 + $0x378] sm:$0xff] %v547
        %740 = vst [vmem:[%s177 + $0x380] sm:$0xff] %v548
        %741 = vst [vmem:[%s177 + $0x388] sm:$0xff] %v549
        %742 = vst [vmem:[%s177 + $0x390] sm:$0xff] %v550
        %743 = vst [vmem:[%s177 + $0x398] sm:$0xff] %v551
        %744 = vst [vmem:[%s177 + $0x3a0] sm:$0xff] %v552
        %745 = vst [vmem:[%s177 + $0x3a8] sm:$0xff] %v553
        %746 = vst [vmem:[%s177 + $0x3b0] sm:$0xff] %v554
        %747 = vst [vmem:[%s177 + $0x3b8] sm:$0xff] %v555
        %748 = vst [vmem:[%s177 + $0x3c0] sm:$0xff] %v556
        %749 = vst [vmem:[%s177 + $0x3c8] sm:$0xff] %v557
        %750 = vst [vmem:[%s177 + $0x3d0] sm:$0xff] %v558
        %751 = vst [vmem:[%s177 + $0x3d8] sm:$0xff] %v559
        %752 = vst [vmem:[%s177 + $0x3e0] sm:$0xff] %v560
        %753 = vst [vmem:[%s177 + $0x3e8] sm:$0xff] %v561
        %754 = vst [vmem:[%s177 + $0x3f0] sm:$0xff] %v562
        %755 = vst [vmem:[%s177 + $0x3f8] sm:$0xff] %v563
        %756 = vst [vmem:[%s177 + $0x400] sm:$0xff] %v564
        %757 = vst [vmem:[%s177 + $0x408] sm:$0xff] %v565
        %758 = vst [vmem:[%s177 + $0x410] sm:$0xff] %v566
        %759 = vst [vmem:[%s177 + $0x418] sm:$0xff] %v567
        %760 = vst [vmem:[%s177 + $0x420] sm:$0xff] %v568
        %761 = vst [vmem:[%s177 + $0x428] sm:$0xff] %v569
        %762 = vst [vmem:[%s177 + $0x430] sm:$0xff] %v570
        %763 = vst [vmem:[%s177 + $0x438] sm:$0xff] %v571
        %764 = vst [vmem:[%s177 + $0x440] sm:$0xff] %v572
        %765 = vst [vmem:[%s177 + $0x448] sm:$0xff] %v573
        %766 = vst [vmem:[%s177 + $0x450] sm:$0xff] %v574
        %767 = vst [vmem:[%s177 + $0x458] sm:$0xff] %v575
        %768 = vst [vmem:[%s177 + $0x460] sm:$0xff] %v576
        %769 = vst [vmem:[%s177 + $0x468] sm:$0xff] %v577
        %770 = vst [vmem:[%s177 + $0x470] sm:$0xff] %v578
        %771 = vst [vmem:[%s177 + $0x478] sm:$0xff] %v579
        %772 = vst [vmem:[%s177 + $0x480] sm:$0xff] %v580
        %773 = vst [vmem:[%s177 + $0x488] sm:$0xff] %v581
        %774 = vst [vmem:[%s177 + $0x490] sm:$0xff] %v582
        %775 = vst [vmem:[%s177 + $0x498] sm:$0xff] %v583
        %776 = vst [vmem:[%s177 + $0x4a0] sm:$0xff] %v584
        %777 = vst [vmem:[%s177 + $0x4a8] sm:$0xff] %v585
        %778 = vst [vmem:[%s177 + $0x4b0] sm:$0xff] %v586
        %779 = vst [vmem:[%s177 + $0x4b8] sm:$0xff] %v587
        %780 = vst [vmem:[%s177 + $0x4c0] sm:$0xff] %v588
        %781 = vst [vmem:[%s177 + $0x4c8] sm:$0xff] %v589
        %782 = vst [vmem:[%s177 + $0x4d0] sm:$0xff] %v590
        %783 = vst [vmem:[%s177 + $0x4d8] sm:$0xff] %v591
        %784 = vst [vmem:[%s177 + $0x4e0] sm:$0xff] %v592
        %785 = vst [vmem:[%s177 + $0x4e8] sm:$0xff] %v593
        %786 = vst [vmem:[%s177 + $0x4f0] sm:$0xff] %v594
        %787 = vst [vmem:[%s177 + $0x4f8] sm:$0xff] %v595
        %788 = vst [vmem:[%s177 + $0x500] sm:$0xff] %v596
        %789 = vst [vmem:[%s177 + $0x508] sm:$0xff] %v597
        %790 = vst [vmem:[%s177 + $0x510] sm:$0xff] %v598
        %791 = vst [vmem:[%s177 + $0x518] sm:$0xff] %v599
        %792 = vst [vmem:[%s177 + $0x520] sm:$0xff] %v600
        %793 = vst [vmem:[%s177 + $0x528] sm:$0xff] %v601
        %794 = vst [vmem:[%s177 + $0x530] sm:$0xff] %v602
        %795 = vst [vmem:[%s177 + $0x538] sm:$0xff] %v603
        %796 = vst [vmem:[%s177 + $0x540] sm:$0xff] %v604
        %797 = vst [vmem:[%s177 + $0x548] sm:$0xff] %v605
        %798 = vst [vmem:[%s177 + $0x550] sm:$0xff] %v606
        %799 = vst [vmem:[%s177 + $0x558] sm:$0xff] %v607
        %800 = vst [vmem:[%s177 + $0x560] sm:$0xff] %v608
        %801 = vst [vmem:[%s177 + $0x568] sm:$0xff] %v609
        %802 = vst [vmem:[%s177 + $0x570] sm:$0xff] %v610
        %803 = vst [vmem:[%s177 + $0x578] sm:$0xff] %v611
        %804 = vst [vmem:[%s177 + $0x580] sm:$0xff] %v612
        %805 = vst [vmem:[%s177 + $0x588] sm:$0xff] %v613
        %806 = vst [vmem:[%s177 + $0x590] sm:$0xff] %v614
        %807 = vst [vmem:[%s177 + $0x598] sm:$0xff] %v615
        %808 = vst [vmem:[%s177 + $0x5a0] sm:$0xff] %v616
        %809 = vst [vmem:[%s177 + $0x5a8] sm:$0xff] %v617
        %810 = vst [vmem:[%s177 + $0x5b0] sm:$0xff] %v618
        %811 = vst [vmem:[%s177 + $0x5b8] sm:$0xff] %v619
        %812 = vst [vmem:[%s177 + $0x5c0] sm:$0xff] %v620
        %813 = vst [vmem:[%s177 + $0x5c8] sm:$0xff] %v621
        %814 = vst [vmem:[%s177 + $0x5d0] sm:$0xff] %v622
        %815 = vst [vmem:[%s177 + $0x5d8] sm:$0xff] %v623
        %816 = vst [vmem:[%s177 + $0x5e0] sm:$0xff] %v624
        %817 = vst [vmem:[%s177 + $0x5e8] sm:$0xff] %v625
        %818 = vst [vmem:[%s177 + $0x5f0] sm:$0xff] %v626
        %819 = vst [vmem:[%s177 + $0x5f8] sm:$0xff] %v627
        %s820 = sand.u32 %s75, 1
        %s821 = scalar_lea.sflag [#allocation4], %s820
        %s822 = sand.u32 %s75, 1
        %s823 = smul.addr %s822, 1536
        %s824 = scalar_lea.vmem [#allocation7], %s823
        // Predicated region
        $region37: #{tpu_custom_call.1} parent=27 // pred_check
          %p825 = pneg %p85
        $region38: #{tpu_custom_call.1} parent=27 // pred_check_branch
          %827 = sbr.rel (%p825) target = $region40
        $region39: #{tpu_custom_call.1} parent=27 // pred_region
          %s828 = smul.u32 3, %s20
          %s830 = ssub.s32 24576, 24576
          %831 = vsyncadd %s821, %s830
          %s832 = smul.addr %s828, 64
          %s833 = smul.addr %s832, 128
          %s834 = scalar_lea.hbm %s2, %s833
          %s835 = sshll.u32 %s824, 4
          %s836 = int_to_ptr.vmem [resolvable:$true] %s835
          %841 = dma.vmem_to_hbm [thread:$0]  %s836, 24576, %s834, %s821, 256, 256, 16
        $region40: #{tpu_custom_call.1} parent=27 // pred_fallthru
          _
      $region28: #{tpu_custom_call.1} parent=5 // pred_fallthru
        _
      %p842 = scmp.le.s32.totalorder 2, %s15
      // Predicated region
      $region41: #{tpu_custom_call.1} parent=5 // pred_check
        %p843 = pneg %p842
      $region42: #{tpu_custom_call.1} parent=5 // pred_check_branch
        %845 = sbr.rel (%p843) target = $region44
      $region43: #{tpu_custom_call.1} parent=5 // pred_region
        %s846 = ssub.s32 %s15, 2
        // Predicated region
        $region45: #{tpu_custom_call.1} parent=43 // pred_check
          %p847 = pneg %p91
        $region46: #{tpu_custom_call.1} parent=43 // pred_check_branch
          %849 = sbr.rel (%p847) target = $region48
        $region47: #{tpu_custom_call.1} parent=43 // pred_region
          %s850 = sand.u32 %s76, 1
          %s851 = scalar_lea.sflag [#allocation4], %s850
          %s852 = sand.u32 %s76, 1
          %s853 = smul.addr %s852, 1536
          %s854 = scalar_lea.vmem [#allocation7], %s853
          %855 = dma.done %s851, 24576
        $region48: #{tpu_custom_call.1} parent=43 // pred_fallthru
          _
      $region44: #{tpu_custom_call.1} parent=5 // pred_fallthru
        _
    $region6: #{tpu_custom_call.1} parent=1 // loop_footer
      %s19 = sadd.s32 1, %s15
    $region7: #{tpu_custom_call.1} parent=1 // loop_footer_branch
      %14 = sbr.rel target = $region3
    $region8: #{tpu_custom_call.1} parent=1 // loop_exit
      _
    %856 = vsyncpa [#allocation3], 1
    %s857 = scalar_lea.sflag [#allocation3], 1
    %858 = vsyncpa %s857, 1
    %859 = vsyncpa [#allocation6], 1
    %s860 = scalar_lea.sflag [#allocation6], 1
    %861 = vsyncpa %s860, 1
    %862 = vsyncpa [#allocation4], 1
    %s863 = scalar_lea.sflag [#allocation4], 1
    %864 = vsyncpa %s863, 1

</llo_original>
